<compile_context>
chip_gen: v6e
topology: v6e:2x2x1
jax: 0.10.0
libtpu: 0.0.40
codegen_flags: <defaults>
</compile_context>

<pallas_src>
import functools

import jax
import jax.numpy as jnp
from jax.experimental import pallas as pl
from jax.experimental.pallas import tpu as pltpu


def _focal_loss_kernel(logits_ref, targets_ref, out_ref, *, gamma, n_rows, mean_reduce):
    i = pl.program_id(0)

    @pl.when(i == 0)
    def _init():
        out_ref[...] = jnp.zeros_like(out_ref)

    x = logits_ref[...].astype(jnp.float32)           # (TN, C)
    tgt = targets_ref[...]                            # (TN, 1) int32
    tn, c = x.shape

    # Valid-row mask for the ragged last tile (padded rows contribute 0).
    row_ids = i * tn + jax.lax.broadcasted_iota(jnp.int32, (tn, 1), 0)
    valid = row_ids < n_rows                          # (TN, 1) bool

    # Target mask (kept boolean; never materialized as a float (TN, C) one-hot).
    class_ids = jax.lax.broadcasted_iota(jnp.int32, (tn, c), 1)
    tmask = class_ids == tgt                          # (TN, C) bool

    # Cross-entropy without materializing log_softmax:
    #   ce = log(sum_c exp(x_c - m)) - (x_t - m)
    m = jnp.max(x, axis=-1, keepdims=True)            # (TN, 1)
    shifted = x - m
    sumexp = jnp.sum(jnp.exp(shifted), axis=-1, keepdims=True)             # (TN, 1)
    xt_shifted = jnp.sum(jnp.where(tmask, shifted, 0.0), axis=-1, keepdims=True)
    ce = jnp.log(sumexp) - xt_shifted                 # (TN, 1)

    pt = jnp.exp(-ce)
    one_minus_pt = 1.0 - pt
    gamma_int = int(gamma)
    if float(gamma) == float(gamma_int) and gamma_int >= 1:
        # Integer gamma: plain VPU multiplies instead of a pow (exp+log on EUP).
        w = one_minus_pt
        for _ in range(gamma_int - 1):
            w = w * one_minus_pt
    else:
        w = one_minus_pt ** gamma
    focal = jnp.where(valid, w * ce, 0.0)             # (TN, 1), padded rows -> 0

    out_ref[...] += jnp.sum(focal, axis=(0, 1), keepdims=True)

    @pl.when(i == pl.num_programs(0) - 1)
    def _finalize():
        if mean_reduce:
            out_ref[...] = out_ref[...] * (1.0 / n_rows)


def _round_up(x, m):
    return ((x + m - 1) // m) * m


def balanced_focal_loss(inputs, targets, *, gamma=2.0, reduction="mean",
                        row_tile=None, vmem_budget_bytes=8 * 1024 * 1024):
    """inputs: (N, C) logits (f32 or bf16); targets: (N,) int class indices.

    Returns the scalar focal loss (alpha=None path of the PyTorch module).
    """
    # TODO(synk): the alpha-weighted path (alpha is not None) and
    # reduction='none' (per-sample output) are not implemented in the kernel.
    if reduction not in ("mean", "sum"):
        raise NotImplementedError("only reduction in {'mean','sum'} supported")

    N, C = inputs.shape
    itemsize = jnp.dtype(inputs.dtype).itemsize

    if row_tile is None:
        # Double-buffered logits tiles must stay well under the default scoped
        # VMEM limits (16 MiB v5e, 32 MiB v6e/v7x; 64 MiB physical on v7x).
        tn = vmem_budget_bytes // max(1, 2 * C * itemsize)
        tn = max(8, min(1024, (tn // 8) * 8))
    else:
        tn = row_tile
    tn = min(tn, _round_up(N, 8))                     # don't tile wider than (padded) N
    grid = (pl.cdiv(N, tn),)

    targets_2d = targets.reshape(N, 1).astype(jnp.int32)
    kernel = functools.partial(
        _focal_loss_kernel,
        gamma=float(gamma),
        n_rows=N,
        mean_reduce=(reduction == "mean"),
    )

    cost = pl.CostEstimate(
        flops=int(8 * N * C),
        transcendentals=int(N * C + 2 * N),
        bytes_accessed=int(N * C * itemsize + N * 4 + 4),
    )

    out = pl.pallas_call(
        kernel,
        out_shape=jax.ShapeDtypeStruct((1, 1), jnp.float32),
        grid=grid,
        in_specs=[
            pl.BlockSpec((tn, C), lambda i: (i, 0)),   # logits tile
            pl.BlockSpec((tn, 1), lambda i: (i, 0)),   # targets tile
        ],
        out_specs=pl.BlockSpec((1, 1), lambda i: (0, 0)),  # resident accumulator
        compiler_params=pltpu.CompilerParams(
            dimension_semantics=("arbitrary",)),
        cost_estimate=cost,
    )(inputs, targets_2d)
    return out[0, 0]


def _reference_balanced_focal_loss(inputs, targets, gamma=2.0, reduction="mean"):
    """Pure-JAX reference mirroring the PyTorch forward exactly (alpha=None)."""
    logp = jax.nn.log_softmax(inputs.astype(jnp.float32), axis=-1)
    ce = -jnp.take_along_axis(logp, targets[:, None].astype(jnp.int32), axis=-1)[:, 0]
    pt = jnp.exp(-ce)
    focal = (1.0 - pt) ** gamma * ce
    return jnp.mean(focal) if reduction == "mean" else jnp.sum(focal)


if __name__ == "__main__":
    key = jax.random.PRNGKey(0)
    k1, k2, k3, k4 = jax.random.split(key, 4)

    # Small shapes consistent with a (batch, num_classes) classification loss.
    N, C = 8, 32
    inputs = jax.random.normal(k1, (N, C), dtype=jnp.float32)
    targets = jax.random.randint(k2, (N,), 0, C, dtype=jnp.int32)

    loss = jax.block_until_ready(balanced_focal_loss(inputs, targets, gamma=2.0))
    ref = _reference_balanced_focal_loss(inputs, targets, gamma=2.0)
    assert jnp.allclose(loss, ref, atol=1e-5, rtol=1e-5), (loss, ref)

    # Second case: ragged N with multiple grid steps (exercises the accumulator
    # init/finalize and the last-tile row masking).
    N2, C2 = 20, 16
    inputs2 = jax.random.normal(k3, (N2, C2), dtype=jnp.float32)
    targets2 = jax.random.randint(k4, (N2,), 0, C2, dtype=jnp.int32)
    loss2 = jax.block_until_ready(
        balanced_focal_loss(inputs2, targets2, gamma=2.0, row_tile=8))
    ref2 = _reference_balanced_focal_loss(inputs2, targets2, gamma=2.0)
    assert jnp.allclose(loss2, ref2, atol=1e-5, rtol=1e-5), (loss2, ref2)

    print("KERNEL_OK")
</pallas_src>

<mosaic_0001>
module attributes {stable_mosaic.version = 11 : i64} {
  func.func @_focal_loss_kernel(%arg0: i32, %arg1: memref<8x32xf32, #tpu.memory_space<vmem>>, %arg2: memref<8x1xi32, #tpu.memory_space<vmem>>, %arg3: memref<1x1xf32, #tpu.memory_space<vmem>>) attributes {dimension_semantics = [#tpu.dimension_semantics<arbitrary>], iteration_bounds = array<i64: 1>, scalar_prefetch = 0 : i64, scratch_operands = 0 : i64, tpu.core_type = #tpu.core_type<tc>, window_params = [{transform_indices = @transform_0, window_bounds = array<i64: 8, 32>}, {transform_indices = @transform_1, window_bounds = array<i64: 8, 1>}, {pipeline_mode = #tpu.pipeline_mode<synchronous>, transform_indices = @transform_2, window_bounds = array<i64: 1, 1>}]} {
    %c0_i32 = arith.constant 0 : i32
    %0 = arith.cmpi eq, %arg0, %c0_i32 : i32
    %1 = arith.extui %0 : i1 to i32
    %c0_i32_0 = arith.constant 0 : i32
    %2 = arith.cmpi ne, %1, %c0_i32_0 : i32
    scf.if %2 {
      %cst_18 = arith.constant 0.000000e+00 : f32
      %47 = vector.broadcast %cst_18 : f32 to vector<1x1xf32>
      %c0_19 = arith.constant 0 : index
      %c0_20 = arith.constant 0 : index
      %48 = vector.load %arg3[%c0_19, %c0_20] : memref<1x1xf32, #tpu.memory_space<vmem>>, vector<1x1xf32>
      tpu.vector_store %arg3[%c0_19, %c0_20], %47 {strides = array<i32>} : memref<1x1xf32, #tpu.memory_space<vmem>>, vector<1x1xf32>,
    } else {
    }
    %c0 = arith.constant 0 : index
    %c0_1 = arith.constant 0 : index
    %3 = vector.load %arg1[%c0, %c0_1] : memref<8x32xf32, #tpu.memory_space<vmem>>, vector<8x32xf32>
    %c0_2 = arith.constant 0 : index
    %c0_3 = arith.constant 0 : index
    %4 = vector.load %arg2[%c0_2, %c0_3] : memref<8x1xi32, #tpu.memory_space<vmem>>, vector<8x1xi32>
    %c8_i32 = arith.constant 8 : i32
    %5 = arith.muli %arg0, %c8_i32 : i32
    %6 = tpu.iota {dimensions = array<i32: 0>} : vector<8x1xi32>
    %7 = vector.broadcast %5 : i32 to vector<8x1xi32>
    %8 = arith.addi %7, %6 : vector<8x1xi32>
    %c8_i32_4 = arith.constant 8 : i32
    %9 = vector.broadcast %c8_i32_4 : i32 to vector<8x1xi32>
    %10 = arith.cmpi slt, %8, %9 : vector<8x1xi32>
    %11 = tpu.iota {dimensions = array<i32: 1>} : vector<8x32xi32>
    %12 = vector.broadcast %4 : vector<8x1xi32> to vector<8x32xi32>
    %13 = arith.cmpi eq, %11, %12 : vector<8x32xi32>
    %cst = arith.constant dense<0xFF800000> : vector<8xf32>
    %14 = vector.multi_reduction <maximumf>, %3, %cst [1] : vector<8x32xf32> to vector<8xf32>
    %15 = vector.shape_cast %14 : vector<8xf32> to vector<8x1xf32>
    %16 = vector.broadcast %15 : vector<8x1xf32> to vector<8x32xf32>
    %17 = arith.subf %3, %16 : vector<8x32xf32>
    %18 = math.exp %17 : vector<8x32xf32>
    %cst_5 = arith.constant dense<0.000000e+00> : vector<8xf32>
    %19 = vector.multi_reduction <add>, %18, %cst_5 [1] : vector<8x32xf32> to vector<8xf32>
    %20 = vector.shape_cast %19 : vector<8xf32> to vector<8x1xf32>
    %cst_6 = arith.constant 0.000000e+00 : f32
    %21 = vector.broadcast %cst_6 : f32 to vector<8x32xf32>
    %22 = arith.select %13, %17, %21 : vector<8x32xi1>, vector<8x32xf32>
    %cst_7 = arith.constant dense<0.000000e+00> : vector<8xf32>
    %23 = vector.multi_reduction <add>, %22, %cst_7 [1] : vector<8x32xf32> to vector<8xf32>
    %24 = vector.shape_cast %23 : vector<8xf32> to vector<8x1xf32>
    %25 = math.log %20 : vector<8x1xf32>
    %26 = arith.subf %25, %24 : vector<8x1xf32>
    %cst_8 = arith.constant 0.000000e+00 : f32
    %27 = vector.broadcast %cst_8 : f32 to vector<8x1xf32>
    %28 = arith.subf %27, %26 : vector<8x1xf32>
    %29 = math.exp %28 : vector<8x1xf32>
    %cst_9 = arith.constant 1.000000e+00 : f32
    %30 = vector.broadcast %cst_9 : f32 to vector<8x1xf32>
    %31 = arith.subf %30, %29 : vector<8x1xf32>
    %32 = arith.mulf %31, %31 : vector<8x1xf32>
    %33 = arith.mulf %32, %26 : vector<8x1xf32>
    %cst_10 = arith.constant 0.000000e+00 : f32
    %34 = vector.broadcast %cst_10 : f32 to vector<8x1xf32>
    %35 = arith.select %10, %33, %34 : vector<8x1xi1>, vector<8x1xf32>
    %c0_11 = arith.constant 0 : index
    %c0_12 = arith.constant 0 : index
    %36 = vector.load %arg3[%c0_11, %c0_12] : memref<1x1xf32, #tpu.memory_space<vmem>>, vector<1x1xf32>
    %37 = vector.shape_cast %35 : vector<8x1xf32> to vector<1x8x1xf32>
    %cst_13 = arith.constant dense<0.000000e+00> : vector<1xf32>
    %38 = vector.multi_reduction <add>, %37, %cst_13 [1, 2] : vector<1x8x1xf32> to vector<1xf32>
    %39 = vector.shape_cast %38 : vector<1xf32> to vector<1x1x1xf32>
    %40 = vector.extract %39[0, 0, 0] : f32 from vector<1x1x1xf32>
    %41 = vector.broadcast %40 : f32 to vector<1x1xf32>
    %42 = arith.addf %36, %41 : vector<1x1xf32>
    %c0_14 = arith.constant 0 : index
    %c0_15 = arith.constant 0 : index
    %43 = vector.load %arg3[%c0_14, %c0_15] : memref<1x1xf32, #tpu.memory_space<vmem>>, vector<1x1xf32>
    tpu.vector_store %arg3[%c0_14, %c0_15], %42 {strides = array<i32>} : memref<1x1xf32, #tpu.memory_space<vmem>>, vector<1x1xf32>,
    %c0_i32_16 = arith.constant 0 : i32
    %44 = arith.cmpi eq, %arg0, %c0_i32_16 : i32
    %45 = arith.extui %44 : i1 to i32
    %c0_i32_17 = arith.constant 0 : i32
    %46 = arith.cmpi ne, %45, %c0_i32_17 : i32
    scf.if %46 {
      %c0_18 = arith.constant 0 : index
      %c0_19 = arith.constant 0 : index
      %47 = vector.load %arg3[%c0_18, %c0_19] : memref<1x1xf32, #tpu.memory_space<vmem>>, vector<1x1xf32>
      %cst_20 = arith.constant 1.250000e-01 : f32
      %48 = vector.broadcast %cst_20 : f32 to vector<1x1xf32>
      %49 = arith.mulf %47, %48 : vector<1x1xf32>
      %c0_21 = arith.constant 0 : index
      %c0_22 = arith.constant 0 : index
      %50 = vector.load %arg3[%c0_21, %c0_22] : memref<1x1xf32, #tpu.memory_space<vmem>>, vector<1x1xf32>
      tpu.vector_store %arg3[%c0_21, %c0_22], %49 {strides = array<i32>} : memref<1x1xf32, #tpu.memory_space<vmem>>, vector<1x1xf32>,
    } else {
    }
    return
  }
  func.func @transform_0(%arg0: i32) -> (i32, i32) {
    %c0_i32 = arith.constant 0 : i32
    %c0_i32_0 = arith.constant 0 : i32
    return %arg0, %c0_i32 : i32, i32
  }
  func.func @transform_1(%arg0: i32) -> (i32, i32) {
    %c0_i32 = arith.constant 0 : i32
    %c0_i32_0 = arith.constant 0 : i32
    return %arg0, %c0_i32 : i32, i32
  }
  func.func @transform_2(%arg0: i32) -> (i32, i32) {
    %c0_i32 = arith.constant 0 : i32
    %c0_i32_0 = arith.constant 0 : i32
    %c0_i32_1 = arith.constant 0 : i32
    return %c0_i32, %c0_i32_0 : i32, i32
  }
}

</mosaic_0001>

<llo_original>
// kernel: tpu_custom_call.1
$region0: #{tpu_custom_call.1}
  #allocation0 [shape = 'u32[]', space=smem, size = 0x4, offset = 0x4, fixed_abs, tag = 'smem constant byte address 0x4 - core index']
  #allocation1 [shape = 'u32[144,128]{1,0:T(1,128)}', space=vmem, size = 0x12000, scoped, tag = 'internal scratch']
  %s0 = inlined_call_operand.vmem [shape: f32[8,32], index: 0, kind: input, shape index: {}]
  %s1 = inlined_call_operand.vmem [shape: s32[8,1], index: 1, kind: input, shape index: {}]
  %s2 = inlined_call_operand.hbm [shape: f32[1,1], index: 2, kind: output, shape index: {}]
  %s3 = sld [smem:[#allocation0]]
  $region26: #{tpu_custom_call.1} parent=0
    _
  %s5 = ssub.s32 1, %s3
  %s6 = scalar_select 0, %s5, %s3
  $region1: #{tpu_custom_call.1} parent=0
    #allocation2 [shape = 'u8[512]{0}', space=vmem, size = 0x400, scoped, tag = 'output window, operand 0, single buffered']
    #allocation3 [shape = 's32[1]{0}', space=sflag, size = 0x4, scoped, tag = 'scoped memory for tpu_custom_call.1']
    %7 = vsyncpa [#allocation3], 0
    // Predicated region
    $region2: #{tpu_custom_call.1} parent=1 // pred_check
      _
    $region3: #{tpu_custom_call.1} parent=1 // pred_check_branch
      %9 = sbr.rel (0) target = $region5
    $region4: #{tpu_custom_call.1} parent=1 // pred_region
      _
    $region5: #{tpu_custom_call.1} parent=1 // pred_fallthru
      _
    // Predicated region
    $region6: #{tpu_custom_call.1} parent=1 // pred_check
      _
    $region7: #{tpu_custom_call.1} parent=1 // pred_check_branch
      %11 = sbr.rel (0) target = $region9
    $region8: #{tpu_custom_call.1} parent=1 // pred_region
      _
    $region9: #{tpu_custom_call.1} parent=1 // pred_fallthru
      _
    %p12 = scmp.eq.s32.totalorder 0, 0
    // Predicated region
    $region10: #{tpu_custom_call.1} parent=1 // pred_check
      %p13 = pneg %p12
    $region11: #{tpu_custom_call.1} parent=1 // pred_check_branch
      %15 = sbr.rel (%p13) target = $region13
    $region12: #{tpu_custom_call.1} parent=1 // pred_region
      %vm16 = vcmask 0
      %17 = vst.msk [vmem:[#allocation2] sm:$0x1] %vm16, 0.0
    $region13: #{tpu_custom_call.1} parent=1 // pred_fallthru
      _
    %v18 = vld [vmem:[%s0] sm:$0xff]
    %v19 = vld [vmem:[%s1] sm:$0xff]
    %s20 = smul.u32 0, 8
    %v21 = vlaneseq
    %v22 = vshrl.u32 %v21, 7
    %v23 = vstv %s20
    %v24 = vadd.s32 %v23, %v22
    %vm25 = vcmp.lt.s32.totalorder %v24, 8
    %v26 = vlaneseq
    %v27 = vand.u32 %v26, 127
    %28 = vset.pattern.permute.xlu0 0
    %29 = vperm.xlu0 %28, %v19
    %v30 = vpop.permute.xlu0 %29
    %vm31 = vcmp.eq.s32.totalorder %v27, %v30
    %vm32 = vcmask 261120
    %v33 = vsel %vm32, %v18, -inf
    %34 = vmax.xlane.f32.xlu0 %v33
    %v35 = vpop.xlane.xlu0 %34
    %v36 = vsub.f32 %v18, %v35
    %v37 = vmul.f32 %v36, 1.442695
    %v38 = vpow.pop %v37
    %v39 = vsel %vm32, %v38, 0.0
    %40 = vadd.xlane.f32.xlu0 %v39
    %v41 = vpop.xlane.xlu0 %40
    %v42 = vsel %vm31, %v36, 0.0
    %v43 = vsel %vm32, %v42, 0.0
    %44 = vadd.xlane.f32.xlu0 %v43
    %v45 = vpop.xlane.xlu0 %44
    %v46 = vlog2.pop %v41
    %v47 = vmul.f32 %v46, 0.6931472
    %v48 = vsub.f32 %v47, %v45
    %v49 = vsub.f32 0.0, %v48
    %v50 = vmul.f32 %v49, 1.442695
    %v51 = vpow.pop %v50
    %v52 = vsub.f32 1.0, %v51
    %v53 = vmul.f32 %v52, %v52
    %v54 = vmul.f32 %v53, %v48
    %v55 = vsel %vm25, %v54, 0.0
    %v56 = vld [vmem:[#allocation2] sm:$0x1]
    %vm57 = vcmask 7168
    %v58 = vsel %vm57, %v55, 0.0
    %59 = vadd.xlane.f32.xlu0 %v58
    %v60 = vpop.xlane.xlu0 %59
    %v61 = vrot.slane %v60, 4
    %v62 = vadd.f32 %v60, %v61
    %v63 = vrot.slane %v62, 2
    %v64 = vadd.f32 %v62, %v63
    %v65 = vrot.slane %v64, 1
    %v66 = vadd.f32 %v64, %v65
    %s67 = vtos %v66
    %v68 = vstv %s67
    %v69 = vadd.f32 %v56, %v68
    %vm70 = vcmask 0
    %71 = vst.msk [vmem:[#allocation2] sm:$0x1] %vm70, %v69
    // Predicated region
    $region14: #{tpu_custom_call.1} parent=1 // pred_check
      %p72 = pneg %p12
    $region15: #{tpu_custom_call.1} parent=1 // pred_check_branch
      %74 = sbr.rel (%p72) target = $region17
    $region16: #{tpu_custom_call.1} parent=1 // pred_region
      %v75 = vld [vmem:[#allocation2] sm:$0x1]
      %v76 = vmul.f32 %v75, 0.125
      %77 = vst.msk [vmem:[#allocation2] sm:$0x1] %vm70, %v76
    $region17: #{tpu_custom_call.1} parent=1 // pred_fallthru
      _
    // Predicated region
    $region18: #{tpu_custom_call.1} parent=1 // pred_check
      _
    $region19: #{tpu_custom_call.1} parent=1 // pred_check_branch
      %79 = sbr.rel (0) target = $region21
    $region20: #{tpu_custom_call.1} parent=1 // pred_region
      %s81 = ssub.s32 16, 16
      %82 = vsyncadd [#allocation3], %s81
      %s84 = sshll.u32 [#allocation2], 4
      %s85 = int_to_ptr.vmem [resolvable:$true] %s84
      %87 = dma.vmem_to_hbm [thread:$0]  %s85, 16, %s2, [#allocation3]
    $region21: #{tpu_custom_call.1} parent=1 // pred_fallthru
      _
    // Predicated region
    $region22: #{tpu_custom_call.1} parent=1 // pred_check
      _
    $region23: #{tpu_custom_call.1} parent=1 // pred_check_branch
      %89 = sbr.rel (0) target = $region25
    $region24: #{tpu_custom_call.1} parent=1 // pred_region
      %90 = dma.done [#allocation3], 16
    $region25: #{tpu_custom_call.1} parent=1 // pred_fallthru
      _
    %91 = vsyncpa [#allocation3], 1

</llo_original>
